<compile_context>
chip_gen: v6e
topology: v6e:2x2x1
jax: 0.10.0
libtpu: 0.0.40
codegen_flags: <defaults>
</compile_context>

<pallas_src>
import functools

import jax
import jax.numpy as jnp
from jax import lax
from jax.experimental import pallas as pl
from jax.experimental.pallas import tpu as pltpu


def get_trans_output_size(input_size, stride, padding, kernel_size):
    return (input_size - 1) * stride - 2 * padding + (kernel_size - 1) + 1


def get_final_output(initial_input_size, number_blocks, number_trans_per_block,
                     stride, padding, kernel_size):
    out_size = initial_input_size
    for _ in range(number_blocks):
        for _ in range(number_trans_per_block):
            out_size = get_trans_output_size(out_size, stride, padding, kernel_size)
    return out_size


def _decoder_kernel(*refs, channels, l0, l_pad, lf):
    """Fused decoder forward for one batch element (grid over batch).

    refs = (x_ref, wcat_0, b_0, ..., wcat_{n-2}, b_{n-2}, wcatT_last, bT_last, out_ref)
      x_ref      : (1, C0, L0)        NCL input block (after UnFlatten)
      wcat_i     : (Cin_i, 2*Cout_i)  [tap0 | tap1] of ConvTranspose1d weight
      b_i        : (1, Cout_i)        bias (middle layers, channels-last)
      wcatT_last : (2*Cf, Cin_last)   transposed [tap0 | tap1] of last layer
      bT_last    : (Cf, 1)            last-layer bias (NCL orientation)
      out_ref    : (1, Cf, Lf)        final activation, NCL, length on lanes
    """
    x_ref = refs[0]
    out_ref = refs[-1]
    params = refs[1:-1]
    n_layers = len(channels) - 1

    x_b = x_ref[0]  # (C0, L0), NCL orientation

    # Transpose-and-pad x: (C0, L0) -> (L_pad, C0) with zero rows for l >= L0.
    # Done as one NT dot_general against a rectangular identity, so we never need
    # an HBM-side transpose in the wrapper nor an XLU transpose in the kernel:
    #   h[l, c] = sum_k I[l, k] * x[c, k] = x[c, l]   (0 for l >= L0).
    eye_p = (lax.broadcasted_iota(jnp.int32, (l_pad, l0), 0) ==
             lax.broadcasted_iota(jnp.int32, (l_pad, l0), 1)).astype(jnp.float32)
    h = lax.dot_general(eye_p, x_b, (((1,), (1,)), ((), ())),
                        preferred_element_type=jnp.float32)      # (L_pad, C0)

    row = lax.broadcasted_iota(jnp.int32, (l_pad, 1), 0)          # row-in-length iota

    # ---- middle layers: channels-last, one 2-D matmul per layer (taps folded in N)
    for i in range(n_layers - 1):
        cin, cout = channels[i], channels[i + 1]
        wcat = params[2 * i][...]                                  # (Cin, 2*Cout)
        bias = params[2 * i + 1][...]                              # (1, Cout)
        ycat = jnp.dot(h, wcat, preferred_element_type=jnp.float32)  # (L_pad, 2*Cout)
        y0 = ycat[:, :cout]                                        # tap-0 -> out[t]
        y1 = ycat[:, cout:]                                        # tap-1 -> out[t+1]
        # shift tap-1 by one step along length; the wrapped row is a zero pad row
        y1s = pltpu.roll(y1, shift=1, axis=0)
        out = y0 + y1s + bias
        valid = row < (l0 + i + 1)                                 # new valid length
        h = jnp.where(valid, jnp.maximum(out, 0.0), 0.0)           # ReLU, keep pad rows 0

    # ---- last layer: computed in NCL orientation (channels on sublanes, length on
    # lanes) via an NT dot with the pre-transposed weight -> lane-dense NCL store.
    cf = channels[-1]
    wcat_t = params[2 * (n_layers - 1)][...]                       # (2*Cf, Cin)
    bias_t = params[2 * (n_layers - 1) + 1][...]                   # (Cf, 1)
    ycat_t = lax.dot_general(wcat_t, h, (((1,), (1,)), ((), ())),
                             preferred_element_type=jnp.float32)   # (2*Cf, L_pad)
    y0t = ycat_t[:cf, :]
    y1t = ycat_t[cf:, :]
    y1ts = pltpu.roll(y1t, shift=1, axis=1)                        # wrap column is zero
    out_t = jnp.maximum(y0t + y1ts + bias_t, 0.0)                  # (Cf, L_pad)
    out_ref[0] = out_t[:, :lf].astype(out_ref.dtype)


class DecoderPallas:
    """Mirror of the PyTorch DECODER module, parameters initialized in-script."""

    def __init__(self, filter_sizes, end_conv_size, clamping_zero_tensor=None,
                 key=jax.random.PRNGKey(0)):
        in_ch = 2
        self.channels = list(filter_sizes)
        if self.channels[-1] != in_ch:
            self.channels.append(in_ch)
        self.end_conv_size = end_conv_size
        self.K = 2  # trans_kernel_size
        self.n_layers = len(self.channels) - 1
        self.final_size = get_final_output(end_conv_size, self.n_layers, 1, 1, 0, self.K)
        self.l_pad = ((self.final_size + 7) // 8) * 8   # 8-aligned static length pad
        # NOTE: in the PyTorch forward, `torch.clamp(x, clamping_zero_tensor)` is not
        # assigned back to x, so it is a no-op; we reproduce that (do nothing).
        self.clamping_zero_tensor = clamping_zero_tensor

        # Deterministic init (mimics PyTorch ConvTranspose1d uniform bound 1/sqrt(Cin*K)).
        self.params = []   # raw (w0, w1, b) per layer -- used by the reference
        for i in range(self.n_layers):
            cin, cout = self.channels[i], self.channels[i + 1]
            key, k1, k2 = jax.random.split(key, 3)
            bound = 1.0 / (cin * self.K) ** 0.5
            w = jax.random.uniform(k1, (cin, cout, self.K), jnp.float32, -bound, bound)
            b = jax.random.uniform(k2, (1, cout), jnp.float32, -bound, bound)
            self.params.append((w[:, :, 0], w[:, :, 1], b))

        # Kernel-side packed parameters (built once, tiny, plain JAX):
        #   middle layers: wcat = [tap0 | tap1] (Cin, 2*Cout), bias (1, Cout)
        #   last layer   : wcat^T (2*Cf, Cin), bias^T (Cf, 1)  -> NCL-oriented output
        self.kernel_params = []
        for i, (w0, w1, b) in enumerate(self.params):
            wcat = jnp.concatenate([w0, w1], axis=1)
            if i == self.n_layers - 1:
                self.kernel_params.extend([wcat.T, b.T])
            else:
                self.kernel_params.extend([wcat, b])

    def __call__(self, x):
        """x: (B, channels[0] * end_conv_size) -> (B, channels[-1], final_size) (NCL)."""
        B = x.shape[0]
        C0, L0 = self.channels[0], self.end_conv_size
        Cf, Lf = self.channels[-1], self.final_size

        # UnFlatten: (B, C0*L0) -> (B, C0, L0). Pure reshape; no HBM transpose.
        x_ncl = x.reshape(B, C0, L0)

        kernel = functools.partial(_decoder_kernel, channels=tuple(self.channels),
                                   l0=L0, l_pad=self.l_pad, lf=Lf)

        in_specs = [pl.BlockSpec((1, C0, L0), lambda b: (b, 0, 0))]
        in_specs += [pl.BlockSpec(p.shape, lambda b: (0, 0)) for p in self.kernel_params]
        out_specs = pl.BlockSpec((1, Cf, Lf), lambda b: (b, 0, 0))

        # Cost estimate: transpose-pad matmul + one matmul per layer, per batch element.
        flops_per_b = 2 * self.l_pad * L0 * C0
        for i in range(self.n_layers):
            flops_per_b += 2 * self.l_pad * self.channels[i] * (2 * self.channels[i + 1])
        bytes_accessed = 4 * (x_ncl.size + B * Cf * Lf
                              + sum(int(p.size) for p in self.kernel_params))
        cost = pl.CostEstimate(flops=B * flops_per_b, transcendentals=0,
                               bytes_accessed=int(bytes_accessed))

        # Explicit VMEM budget: double-buffered in/out blocks + resident weights +
        # padded live intermediates, with generous headroom (well under v7x's 64 MiB).
        def _tile_bytes(r, c):
            return ((r + 7) // 8 * 8) * ((c + 127) // 128 * 128) * 4
        vmem_bytes = 2 * _tile_bytes(C0, L0) + 2 * _tile_bytes(Cf, Lf)
        vmem_bytes += 2 * sum(_tile_bytes(*p.shape) for p in self.kernel_params)
        vmem_bytes += 16 * _tile_bytes(self.l_pad, 2 * max(self.channels))
        vmem_limit = max(4 * vmem_bytes, 4 * 1024 * 1024)

        out = pl.pallas_call(
            kernel,
            out_shape=jax.ShapeDtypeStruct((B, Cf, Lf), jnp.float32),
            grid=(B,),
            in_specs=in_specs,
            out_specs=out_specs,
            compiler_params=pltpu.CompilerParams(
                dimension_semantics=("parallel",),
                vmem_limit_bytes=int(vmem_limit)),
            cost_estimate=cost,
        )(x_ncl, *self.kernel_params)

        return out  # already NCL (B, Cf, Lf); no wrapper transpose

    def reference(self, x):
        """Plain-JAX reference of the forward pass (NCL layout), for validation."""
        B = x.shape[0]
        C0, L0 = self.channels[0], self.end_conv_size
        h = x.reshape(B, C0, L0)
        for w0, w1, b in self.params:
            y0 = jnp.einsum('bcl,co->bol', h, w0)
            y1 = jnp.einsum('bcl,co->bol', h, w1)
            out = (jnp.pad(y0, ((0, 0), (0, 0), (0, 1)))
                   + jnp.pad(y1, ((0, 0), (0, 0), (1, 0)))
                   + b[0][None, :, None])
            h = jax.nn.relu(out)
        return h


if __name__ == "__main__":
    key = jax.random.PRNGKey(0)
    kp, kx = jax.random.split(key)

    filter_sizes = [8, 4]   # -> channels [8, 4, 2]
    end_conv_size = 8
    B = 2

    dec = DecoderPallas(filter_sizes, end_conv_size, clamping_zero_tensor=None, key=kp)

    x = jax.random.normal(kx, (B, dec.channels[0] * end_conv_size), jnp.float32)

    y = dec(x)
    jax.block_until_ready(y)

    y_ref = dec.reference(x)
    assert y.shape == (B, dec.channels[-1], dec.final_size), y.shape
    assert jnp.allclose(y, y_ref, atol=1e-4, rtol=1e-4), "mismatch vs plain-JAX reference"
    print("KERNEL_OK")
</pallas_src>

<mosaic_0001>
module attributes {stable_mosaic.version = 11 : i64} {
  func.func @_decoder_kernel(%arg0: i32, %arg1: memref<1x8x8xf32, #tpu.memory_space<vmem>>, %arg2: memref<8x8xf32, #tpu.memory_space<vmem>>, %arg3: memref<1x4xf32, #tpu.memory_space<vmem>>, %arg4: memref<4x4xf32, #tpu.memory_space<vmem>>, %arg5: memref<2x1xf32, #tpu.memory_space<vmem>>, %arg6: memref<1x2x10xf32, #tpu.memory_space<vmem>>) attributes {dimension_semantics = [#tpu.dimension_semantics<parallel>], iteration_bounds = array<i64: 2>, scalar_prefetch = 0 : i64, scratch_operands = 0 : i64, tpu.core_type = #tpu.core_type<tc>, window_params = [{transform_indices = @transform_0, window_bounds = array<i64: 1, 8, 8>}, {pipeline_mode = #tpu.pipeline_mode<synchronous>, transform_indices = @transform_1, window_bounds = array<i64: 8, 8>}, {pipeline_mode = #tpu.pipeline_mode<synchronous>, transform_indices = @transform_2, window_bounds = array<i64: 1, 4>}, {pipeline_mode = #tpu.pipeline_mode<synchronous>, transform_indices = @transform_3, window_bounds = array<i64: 4, 4>}, {pipeline_mode = #tpu.pipeline_mode<synchronous>, transform_indices = @transform_4, window_bounds = array<i64: 2, 1>}, {transform_indices = @transform_5, window_bounds = array<i64: 1, 2, 10>}]} {
    %c0 = arith.constant 0 : index
    %c0_0 = arith.constant 0 : index
    %c0_1 = arith.constant 0 : index
    %0 = vector.load %arg1[%c0, %c0_0, %c0_1] : memref<1x8x8xf32, #tpu.memory_space<vmem>>, vector<1x8x8xf32>
    %1 = vector.shape_cast %0 : vector<1x8x8xf32> to vector<8x8xf32>
    %2 = tpu.iota {dimensions = array<i32: 0>} : vector<16x8xi32>
    %3 = tpu.iota {dimensions = array<i32: 1>} : vector<16x8xi32>
    %4 = arith.cmpi eq, %2, %3 : vector<16x8xi32>
    %5 = arith.extui %4 : vector<16x8xi1> to vector<16x8xi32>
    %6 = arith.sitofp %5 : vector<16x8xi32> to vector<16x8xf32>
    %cst = arith.constant dense<0.000000e+00> : vector<16x8xf32>
    %7 = tpu.matmul %6, %1, %cst {dimension_numbers = #tpu.dot_dimension_numbers<[1], [1], [0], [0], [0, 0, 1, 0], [], []>} : vector<16x8xf32>, vector<8x8xf32>, vector<16x8xf32> -> vector<16x8xf32>
    %8 = tpu.iota {dimensions = array<i32: 0>} : vector<16x1xi32>
    %c0_2 = arith.constant 0 : index
    %c0_3 = arith.constant 0 : index
    %9 = vector.load %arg2[%c0_2, %c0_3] : memref<8x8xf32, #tpu.memory_space<vmem>>, vector<8x8xf32>
    %c0_4 = arith.constant 0 : index
    %c0_5 = arith.constant 0 : index
    %10 = vector.load %arg3[%c0_4, %c0_5] : memref<1x4xf32, #tpu.memory_space<vmem>>, vector<1x4xf32>
    %cst_6 = arith.constant dense<0.000000e+00> : vector<16x8xf32>
    %11 = tpu.matmul %7, %9, %cst_6 {dimension_numbers = #tpu.dot_dimension_numbers<[1], [0], [0], [1], [0, 0, 1, 1], [], []>} : vector<16x8xf32>, vector<8x8xf32>, vector<16x8xf32> -> vector<16x8xf32>
    %12 = vector.extract_strided_slice %11 {offsets = [0, 0], sizes = [16, 4], strides = [1, 1]} : vector<16x8xf32> to vector<16x4xf32>
    %13 = vector.extract_strided_slice %11 {offsets = [0, 4], sizes = [16, 4], strides = [1, 1]} : vector<16x8xf32> to vector<16x4xf32>
    %c1_i32 = arith.constant 1 : i32
    %14 = tpu.dynamic_rotate %13 by %c1_i32 dim 0 : vector<16x4xf32>, i32 -> vector<16x4xf32>
    %15 = arith.addf %12, %14 : vector<16x4xf32>
    %16 = vector.broadcast %10 : vector<1x4xf32> to vector<16x4xf32>
    %17 = arith.addf %15, %16 : vector<16x4xf32>
    %c9_i32 = arith.constant 9 : i32
    %18 = vector.broadcast %c9_i32 : i32 to vector<16x1xi32>
    %19 = arith.cmpi slt, %8, %18 : vector<16x1xi32>
    %cst_7 = arith.constant 0.000000e+00 : f32
    %20 = vector.broadcast %cst_7 : f32 to vector<16x4xf32>
    %21 = arith.maximumf %17, %20 : vector<16x4xf32>
    %cst_8 = arith.constant 0.000000e+00 : f32
    %22 = vector.shape_cast %19 : vector<16x1xi1> to vector<16x1xi1>
    %23 = vector.broadcast %22 : vector<16x1xi1> to vector<16x4xi1>
    %24 = vector.broadcast %cst_8 : f32 to vector<16x4xf32>
    %25 = arith.select %23, %21, %24 : vector<16x4xi1>, vector<16x4xf32>
    %c0_9 = arith.constant 0 : index
    %c0_10 = arith.constant 0 : index
    %26 = vector.load %arg4[%c0_9, %c0_10] : memref<4x4xf32, #tpu.memory_space<vmem>>, vector<4x4xf32>
    %c0_11 = arith.constant 0 : index
    %c0_12 = arith.constant 0 : index
    %27 = vector.load %arg5[%c0_11, %c0_12] : memref<2x1xf32, #tpu.memory_space<vmem>>, vector<2x1xf32>
    %cst_13 = arith.constant dense<0.000000e+00> : vector<4x16xf32>
    %28 = tpu.matmul %26, %25, %cst_13 {dimension_numbers = #tpu.dot_dimension_numbers<[1], [1], [0], [0], [0, 0, 1, 0], [], []>} : vector<4x4xf32>, vector<16x4xf32>, vector<4x16xf32> -> vector<4x16xf32>
    %29 = vector.extract_strided_slice %28 {offsets = [0, 0], sizes = [2, 16], strides = [1, 1]} : vector<4x16xf32> to vector<2x16xf32>
    %30 = vector.extract_strided_slice %28 {offsets = [2, 0], sizes = [2, 16], strides = [1, 1]} : vector<4x16xf32> to vector<2x16xf32>
    %c1_i32_14 = arith.constant 1 : i32
    %31 = tpu.dynamic_rotate %30 by %c1_i32_14 dim 1 : vector<2x16xf32>, i32 -> vector<2x16xf32>
    %32 = arith.addf %29, %31 : vector<2x16xf32>
    %33 = vector.broadcast %27 : vector<2x1xf32> to vector<2x16xf32>
    %34 = arith.addf %32, %33 : vector<2x16xf32>
    %cst_15 = arith.constant 0.000000e+00 : f32
    %35 = vector.broadcast %cst_15 : f32 to vector<2x16xf32>
    %36 = arith.maximumf %34, %35 : vector<2x16xf32>
    %37 = vector.extract_strided_slice %36 {offsets = [0, 0], sizes = [2, 10], strides = [1, 1]} : vector<2x16xf32> to vector<2x10xf32>
    %c0_16 = arith.constant 0 : index
    %c0_17 = arith.constant 0 : index
    %c0_18 = arith.constant 0 : index
    %38 = vector.load %arg6[%c0_16, %c0_17, %c0_18] : memref<1x2x10xf32, #tpu.memory_space<vmem>>, vector<1x2x10xf32>
    %39 = vector.shape_cast %38 : vector<1x2x10xf32> to vector<2x10xf32>
    %40 = vector.shape_cast %37 : vector<2x10xf32> to vector<1x2x10xf32>
    tpu.vector_store %arg6[%c0_16, %c0_17, %c0_18], %40 {strides = array<i32>} : memref<1x2x10xf32, #tpu.memory_space<vmem>>, vector<1x2x10xf32>,
    return
  }
  func.func @transform_0(%arg0: i32) -> (i32, i32, i32) {
    %c0_i32 = arith.constant 0 : i32
    %c0_i32_0 = arith.constant 0 : i32
    %c0_i32_1 = arith.constant 0 : i32
    return %arg0, %c0_i32, %c0_i32_0 : i32, i32, i32
  }
  func.func @transform_1(%arg0: i32) -> (i32, i32) {
    %c0_i32 = arith.constant 0 : i32
    %c0_i32_0 = arith.constant 0 : i32
    %c0_i32_1 = arith.constant 0 : i32
    return %c0_i32, %c0_i32_0 : i32, i32
  }
  func.func @transform_2(%arg0: i32) -> (i32, i32) {
    %c0_i32 = arith.constant 0 : i32
    %c0_i32_0 = arith.constant 0 : i32
    %c0_i32_1 = arith.constant 0 : i32
    return %c0_i32, %c0_i32_0 : i32, i32
  }
  func.func @transform_3(%arg0: i32) -> (i32, i32) {
    %c0_i32 = arith.constant 0 : i32
    %c0_i32_0 = arith.constant 0 : i32
    %c0_i32_1 = arith.constant 0 : i32
    return %c0_i32, %c0_i32_0 : i32, i32
  }
  func.func @transform_4(%arg0: i32) -> (i32, i32) {
    %c0_i32 = arith.constant 0 : i32
    %c0_i32_0 = arith.constant 0 : i32
    %c0_i32_1 = arith.constant 0 : i32
    return %c0_i32, %c0_i32_0 : i32, i32
  }
  func.func @transform_5(%arg0: i32) -> (i32, i32, i32) {
    %c0_i32 = arith.constant 0 : i32
    %c0_i32_0 = arith.constant 0 : i32
    %c0_i32_1 = arith.constant 0 : i32
    return %arg0, %c0_i32, %c0_i32_0 : i32, i32, i32
  }
}

</mosaic_0001>

<llo_original>
// kernel: tpu_custom_call.1
$region0: #{tpu_custom_call.1}
  #allocation0 [shape = 'u32[]', space=smem, size = 0x4, offset = 0x4, fixed_abs, tag = 'smem constant byte address 0x4 - core index']
  #allocation1 [shape = 'u32[144,128]{1,0:T(1,128)}', space=vmem, size = 0x12000, scoped, tag = 'internal scratch']
  %s0 = inlined_call_operand.hbm [shape: f32[2,8,8], index: 0, kind: input, shape index: {}]
  %s1 = inlined_call_operand.hbm [shape: f32[8,8], index: 1, kind: input, shape index: {}]
  %s2 = inlined_call_operand.vmem [shape: f32[1,4], index: 2, kind: input, shape index: {}]
  %s3 = inlined_call_operand.vmem [shape: f32[4,4], index: 3, kind: input, shape index: {}]
  %s4 = inlined_call_operand.vmem [shape: f32[2,1], index: 4, kind: input, shape index: {}]
  %s5 = inlined_call_operand.hbm [shape: f32[2,2,10], index: 5, kind: output, shape index: {}]
  %s6 = sld [smem:[#allocation0]]
  $region61: #{tpu_custom_call.1} parent=0
    _
  %s8 = ssub.s32 1, %s6
  %s9 = scalar_select 0, %s8, %s6
  $region1: #{tpu_custom_call.1} parent=0
    #allocation2 [shape = 'u8[8192]{0}', space=vmem, size = 0x2000, scoped, tag = 'input window, operand 0']
    #allocation3 [shape = 's32[2]{0}', space=sflag, size = 0x8, scoped, tag = 'scoped memory for tpu_custom_call.1']
    #allocation4 [shape = 's32[2]{0}', space=sflag, size = 0x8, scoped, tag = 'scoped memory for tpu_custom_call.1']
    #allocation5 [shape = 'u8[4096]{0}', space=vmem, size = 0x1000, scoped, tag = 'input window, operand 1, single buffered']
    #allocation6 [shape = 's32[1]{0}', space=sflag, size = 0x4, scoped, tag = 'scoped memory for tpu_custom_call.1']
    #allocation7 [shape = 'u8[2048]{0}', space=vmem, size = 0x800, scoped, tag = 'output window, operand 0']
    %10 = vsyncpa [#allocation3], 0
    %s11 = scalar_lea.sflag [#allocation3], 1
    %12 = vsyncpa %s11, 0
    %13 = vsyncpa [#allocation6], 0
    %14 = vsyncpa [#allocation4], 0
    %s15 = scalar_lea.sflag [#allocation4], 1
    %16 = vsyncpa %s15, 0
    loop: start=0, step=1, limit=4
    $region2: #{tpu_custom_call.1} parent=1 // loop_pre_header
      _
    $region3: #{tpu_custom_call.1} parent=1 // loop_header
      %s18 = sphi 0, %s22
      %p19 = scmp.ge.s32.totalorder %s18, 4
      %s28 = sphi 0, %s30
      %s31 = sphi 0, %s28
      %s32 = sphi 0, %s31
      %s48 = sphi 0, %s32
      %s52 = sphi 0, %s52
      %s54 = sphi 0, %s52
      %s55 = sphi 0, %s54
      %s69 = sphi 0, %s55
      %s73 = sphi 0, %s73
      %s75 = sphi 0, %s73
      %s76 = sphi 0, %s75
      %s90 = sphi 0, %s76
      %s94 = sphi 0, %s94
      %s96 = sphi 0, %s94
      %s97 = sphi 0, %s96
      %s111 = sphi 0, %s97
      %s115 = sphi 0, %s115
      %s117 = sphi 0, %s115
      %s118 = sphi 0, %s117
      %s132 = sphi 0, %s118
      %s138 = sphi 0, %s140
      %s141 = sphi 0, %s138
      %s142 = sphi 0, %s141
      %s158 = sphi 0, %s142
    $region4: #{tpu_custom_call.1} parent=1 // loop_header_branch
      %21 = sbr.rel (%p19) target = $region8
    $region5: #{tpu_custom_call.1} parent=1 // loop_body
      %s23 = ssub.s32 %s18, 1
      %s24 = ssub.s32 %s18, 2
      %s25 = sadd.s32 %s18, 1
      %s26 = ssub.s32 %s18, %s25
      %p27 = scmp.eq.s32.totalorder %s26, 0
      %s29 = sadd.s32 %s28, 1
      %s30 = scalar_select %p27, %s28, %s29
      %p33 = pneg %p27
      %p34 = scmp.eq.s32.totalorder %s18, 1
      %p35 = por %p33, %p34
      %p36 = scmp.ne.s32.totalorder %s28, %s31
      %p37 = scmp.eq.s32.totalorder %s18, 0
      %p38 = por %p36, %p37
      %p39 = scmp.ne.s32.totalorder %s28, %s31
      %p40 = scmp.eq.s32.totalorder %s23, 1
      %p41 = por %p39, %p40
      %p42 = scmp.ne.s32.totalorder %s31, %s32
      %p43 = scmp.eq.s32.totalorder %s23, 0
      %p44 = por %p42, %p43
      %p45 = scmp.ne.s32.totalorder %s31, %s32
      %p46 = scmp.eq.s32.totalorder %s24, 1
      %p47 = por %p45, %p46
      %p49 = scmp.ne.s32.totalorder %s32, %s48
      %p50 = scmp.eq.s32.totalorder %s24, 0
      %p51 = por %p49, %p50
      %s53 = sadd.s32 %s52, 1
      %p56 = scmp.eq.s32.totalorder %s18, 1
      %p57 = scmp.ne.s32.totalorder %s52, %s54
      %p58 = scmp.eq.s32.totalorder %s18, 0
      %p59 = por %p57, %p58
      %p60 = scmp.ne.s32.totalorder %s52, %s54
      %p61 = scmp.eq.s32.totalorder %s23, 1
      %p62 = por %p60, %p61
      %p63 = scmp.ne.s32.totalorder %s54, %s55
      %p64 = scmp.eq.s32.totalorder %s23, 0
      %p65 = por %p63, %p64
      %p66 = scmp.ne.s32.totalorder %s54, %s55
      %p67 = scmp.eq.s32.totalorder %s24, 1
      %p68 = por %p66, %p67
      %p70 = scmp.ne.s32.totalorder %s55, %s69
      %p71 = scmp.eq.s32.totalorder %s24, 0
      %p72 = por %p70, %p71
      %s74 = sadd.s32 %s73, 1
      %p77 = scmp.eq.s32.totalorder %s18, 1
      %p78 = scmp.ne.s32.totalorder %s73, %s75
      %p79 = scmp.eq.s32.totalorder %s18, 0
      %p80 = por %p78, %p79
      %p81 = scmp.ne.s32.totalorder %s73, %s75
      %p82 = scmp.eq.s32.totalorder %s23, 1
      %p83 = por %p81, %p82
      %p84 = scmp.ne.s32.totalorder %s75, %s76
      %p85 = scmp.eq.s32.totalorder %s23, 0
      %p86 = por %p84, %p85
      %p87 = scmp.ne.s32.totalorder %s75, %s76
      %p88 = scmp.eq.s32.totalorder %s24, 1
      %p89 = por %p87, %p88
      %p91 = scmp.ne.s32.totalorder %s76, %s90
      %p92 = scmp.eq.s32.totalorder %s24, 0
      %p93 = por %p91, %p92
      %s95 = sadd.s32 %s94, 1
      %p98 = scmp.eq.s32.totalorder %s18, 1
      %p99 = scmp.ne.s32.totalorder %s94, %s96
      %p100 = scmp.eq.s32.totalorder %s18, 0
      %p101 = por %p99, %p100
      %p102 = scmp.ne.s32.totalorder %s94, %s96
      %p103 = scmp.eq.s32.totalorder %s23, 1
      %p104 = por %p102, %p103
      %p105 = scmp.ne.s32.totalorder %s96, %s97
      %p106 = scmp.eq.s32.totalorder %s23, 0
      %p107 = por %p105, %p106
      %p108 = scmp.ne.s32.totalorder %s96, %s97
      %p109 = scmp.eq.s32.totalorder %s24, 1
      %p110 = por %p108, %p109
      %p112 = scmp.ne.s32.totalorder %s97, %s111
      %p113 = scmp.eq.s32.totalorder %s24, 0
      %p114 = por %p112, %p113
      %s116 = sadd.s32 %s115, 1
      %p119 = scmp.eq.s32.totalorder %s18, 1
      %p120 = scmp.ne.s32.totalorder %s115, %s117
      %p121 = scmp.eq.s32.totalorder %s18, 0
      %p122 = por %p120, %p121
      %p123 = scmp.ne.s32.totalorder %s115, %s117
      %p124 = scmp.eq.s32.totalorder %s23, 1
      %p125 = por %p123, %p124
      %p126 = scmp.ne.s32.totalorder %s117, %s118
      %p127 = scmp.eq.s32.totalorder %s23, 0
      %p128 = por %p126, %p127
      %p129 = scmp.ne.s32.totalorder %s117, %s118
      %p130 = scmp.eq.s32.totalorder %s24, 1
      %p131 = por %p129, %p130
      %p133 = scmp.ne.s32.totalorder %s118, %s132
      %p134 = scmp.eq.s32.totalorder %s24, 0
      %p135 = por %p133, %p134
      %s136 = ssub.s32 %s18, %s25
      %p137 = scmp.eq.s32.totalorder %s136, 0
      %s139 = sadd.s32 %s138, 1
      %s140 = scalar_select %p137, %s138, %s139
      %p143 = pneg %p137
      %p144 = scmp.eq.s32.totalorder %s18, 1
      %p145 = por %p143, %p144
      %p146 = scmp.ne.s32.totalorder %s138, %s141
      %p147 = scmp.eq.s32.totalorder %s18, 0
      %p148 = por %p146, %p147
      %p149 = scmp.ne.s32.totalorder %s138, %s141
      %p150 = scmp.eq.s32.totalorder %s23, 1
      %p151 = por %p149, %p150
      %p152 = scmp.ne.s32.totalorder %s141, %s142
      %p153 = scmp.eq.s32.totalorder %s23, 0
      %p154 = por %p152, %p153
      %p155 = scmp.ne.s32.totalorder %s141, %s142
      %p156 = scmp.eq.s32.totalorder %s24, 1
      %p157 = por %p155, %p156
      %p159 = scmp.ne.s32.totalorder %s142, %s158
      %p160 = scmp.eq.s32.totalorder %s24, 0
      %p161 = por %p159, %p160
      %p162 = scmp.le.s32.totalorder 1, %s18
      %p163 = scmp.lt.s32.totalorder %s18, 3
      %p164 = pnand %p162, %p163
      %p165 = pneg %p164
      // Predicated region
      $region9: #{tpu_custom_call.1} parent=5 // pred_check
        _
      $region10: #{tpu_custom_call.1} parent=5 // pred_check_branch
        %167 = sbr.rel (%p164) target = $region12
      $region11: #{tpu_custom_call.1} parent=5 // pred_region
        %s168 = ssub.s32 %s18, 1
        // Predicated region
        $region13: #{tpu_custom_call.1} parent=11 // pred_check
          %p169 = pneg %p65
        $region14: #{tpu_custom_call.1} parent=11 // pred_check_branch
          %171 = sbr.rel (%p169) target = $region16
        $region15: #{tpu_custom_call.1} parent=11 // pred_region
          %s173 = ssub.s32 128, 128
          %174 = vsyncadd [#allocation6], %s173
          %s176 = sshll.u32 [#allocation5], 4
          %s177 = int_to_ptr.vmem [resolvable:$true] %s176
          %179 = dma.hbm_to_vmem [thread:$0]  %s1, 128, %s177, [#allocation6]
        $region16: #{tpu_custom_call.1} parent=11 // pred_fallthru
          _
        // Predicated region
        $region17: #{tpu_custom_call.1} parent=11 // pred_check
          %p180 = pneg %p86
        $region18: #{tpu_custom_call.1} parent=11 // pred_check_branch
          %182 = sbr.rel (%p180) target = $region20
        $region19: #{tpu_custom_call.1} parent=11 // pred_region
          _
        $region20: #{tpu_custom_call.1} parent=11 // pred_fallthru
          _
        // Predicated region
        $region21: #{tpu_custom_call.1} parent=11 // pred_check
          %p183 = pneg %p107
        $region22: #{tpu_custom_call.1} parent=11 // pred_check_branch
          %185 = sbr.rel (%p183) target = $region24
        $region23: #{tpu_custom_call.1} parent=11 // pred_region
          _
        $region24: #{tpu_custom_call.1} parent=11 // pred_fallthru
          _
        // Predicated region
        $region25: #{tpu_custom_call.1} parent=11 // pred_check
          %p186 = pneg %p128
        $region26: #{tpu_custom_call.1} parent=11 // pred_check_branch
          %188 = sbr.rel (%p186) target = $region28
        $region27: #{tpu_custom_call.1} parent=11 // pred_region
          _
        $region28: #{tpu_custom_call.1} parent=11 // pred_fallthru
          _
      $region12: #{tpu_custom_call.1} parent=5 // pred_fallthru
        _
      %p189 = scmp.lt.s32.totalorder %s18, 2
      // Predicated region
      $region29: #{tpu_custom_call.1} parent=5 // pred_check
        %p190 = pneg %p189
      $region30: #{tpu_custom_call.1} parent=5 // pred_check_branch
        %192 = sbr.rel (%p190) target = $region32
      $region31: #{tpu_custom_call.1} parent=5 // pred_region
        // Predicated region
        $region33: #{tpu_custom_call.1} parent=31 // pred_check
          %p193 = pneg %p38
        $region34: #{tpu_custom_call.1} parent=31 // pred_check_branch
          %195 = sbr.rel (%p193) target = $region36
        $region35: #{tpu_custom_call.1} parent=31 // pred_region
          %s196 = sand.u32 %s28, 1
          %s197 = scalar_lea.sflag [#allocation3], %s196
          %s198 = sand.u32 %s28, 1
          %s199 = smul.addr %s198, 8
          %s200 = scalar_lea.vmem [#allocation2], %s199
          %s202 = ssub.s32 128, 128
          %203 = vsyncadd %s197, %s202
          %s204 = smul.addr %s18, 128
          %s205 = scalar_lea.hbm %s0, %s204
          %s207 = sshll.u32 %s200, 4
          %s208 = int_to_ptr.vmem [resolvable:$true] %s207
          %210 = dma.hbm_to_vmem [thread:$0]  %s205, 128, %s208, %s197
        $region36: #{tpu_custom_call.1} parent=31 // pred_fallthru
          _
      $region32: #{tpu_custom_call.1} parent=5 // pred_fallthru
        _
      %p211 = scmp.le.s32.totalorder 1, %s18
      %p212 = scmp.lt.s32.totalorder %s18, 3
      %p213 = pnand %p211, %p212
      %p214 = pneg %p213
      // Predicated region
      $region37: #{tpu_custom_call.1} parent=5 // pred_check
        _
      $region38: #{tpu_custom_call.1} parent=5 // pred_check_branch
        %216 = sbr.rel (%p213) target = $region40
      $region39: #{tpu_custom_call.1} parent=5 // pred_region
        %s217 = ssub.s32 %s18, 1
        %s218 = sand.u32 %s31, 1
        %s219 = scalar_lea.sflag [#allocation3], %s218
        %s220 = sand.u32 %s31, 1
        %s221 = smul.addr %s220, 8
        %s222 = scalar_lea.vmem [#allocation2], %s221
        // Predicated region
        $region41: #{tpu_custom_call.1} parent=39 // pred_check
          %p223 = pneg %p44
        $region42: #{tpu_custom_call.1} parent=39 // pred_check_branch
          %225 = sbr.rel (%p223) target = $region44
        $region43: #{tpu_custom_call.1} parent=39 // pred_region
          %226 = dma.done %s219, 128
        $region44: #{tpu_custom_call.1} parent=39 // pred_fallthru
          _
        // Predicated region
        $region45: #{tpu_custom_call.1} parent=39 // pred_check
          %p227 = pneg %p65
        $region46: #{tpu_custom_call.1} parent=39 // pred_check_branch
          %229 = sbr.rel (%p227) target = $region48
        $region47: #{tpu_custom_call.1} parent=39 // pred_region
          %230 = dma.done [#allocation6], 128
        $region48: #{tpu_custom_call.1} parent=39 // pred_fallthru
          _
        %s231 = sand.u32 %s31, 1
        %s232 = scalar_lea.sflag [#allocation3], %s231
        %s233 = sand.u32 %s31, 1
        %s234 = smul.addr %s233, 8
        %s235 = scalar_lea.vmem [#allocation2], %s234
        %p236 = pneg %p44
        %p237 = pneg %p41
        %p238 = pneg %p65
        %p239 = pneg %p62
        %p240 = pneg %p86
        %p241 = pneg %p83
        %p242 = pneg %p107
        %p243 = pneg %p104
        %p244 = pneg %p128
        %p245 = pneg %p125
        %p246 = pneg %p154
        %p247 = pneg %p151
        %s248 = sand.u32 %s141, 1
        %s249 = scalar_lea.sflag [#allocation4], %s248
        %s250 = sand.u32 %s141, 1
        %s251 = smul.addr %s250, 2
        %s252 = scalar_lea.vmem [#allocation7], %s251
        %v253 = vld [vmem:[%s222] sm:$0xff]
        %v254 = vlaneseq
        %v255 = vshrl.u32 %v254, 7
        %v256 = vadd.s32 %v255, 8
        %v257 = vlaneseq
        %v258 = vand.u32 %v257, 127
        %vm259 = vcmp.eq.s32.totalorder %v255, %v258
        %vm260 = vcmp.eq.s32.totalorder %v256, %v258
        %v261 = vsel %vm259, 1, 0
        %v262 = vsel %vm260, 1, 0
        %v263 = vcvt.s32.f32 %v261
        %v264 = vcvt.s32.f32 %v262
        %vm265 = vcmask 64512
        %v267 = vsel %vm265, %v263, 0
        %v270 = vsel %vm265, %v264, 0
        %v273 = vsel %vm265, %v253, 0
        %275 = vmatprep.subr.mxu0 0.0
        %276 = vmatpush1.xpose.msra.mxu0 0.0
        %277 = vmatprep.subr.mxu0 0.0
        %278 = vmatpush1.xpose.msra.mxu0 0.0
        %279 = vmatprep.subr.mxu0 0.0
        %280 = vmatpush1.xpose.msra.mxu0 0.0
        %281 = vmatprep.subr.mxu0 0.0
        %282 = vmatpush1.xpose.msra.mxu0 0.0
        %283 = vmatprep.subr.mxu0 0.0
        %284 = vmatpush1.xpose.msra.mxu0 0.0
        %285 = vmatprep.subr.mxu0 0.0
        %286 = vmatpush1.xpose.msra.mxu0 0.0
        %287 = vmatprep.subr.mxu0 0.0
        %288 = vmatpush1.xpose.msra.mxu0 0.0
        %289 = vmatprep.subr.mxu0 0.0
        %290 = vmatpush1.xpose.msra.mxu0 0.0
        %291 = vmatprep.subr.mxu0 0.0
        %292 = vmatpush1.xpose.msra.mxu0 0.0
        %293 = vmatprep.subr.mxu0 0.0
        %294 = vmatpush1.xpose.msra.mxu0 0.0
        %295 = vmatprep.subr.mxu0 0.0
        %296 = vmatpush1.xpose.msra.mxu0 0.0
        %297 = vmatprep.subr.mxu0 0.0
        %298 = vmatpush1.xpose.msra.mxu0 0.0
        %299 = vmatprep.subr.mxu0 0.0
        %300 = vmatpush1.xpose.msra.mxu0 0.0
        %301 = vmatprep.subr.mxu0 0.0
        %302 = vmatpush1.xpose.msra.mxu0 0.0
        %303 = vmatprep.subr.mxu0 0.0
        %304 = vmatpush1.xpose.msra.mxu0 0.0
        %305 = vmatprep.subr.mxu0 0.0
        %306 = vmatpush1.xpose.msra.mxu0 %v273
        %307 = vmatprep.subr.mxu0 0.0
        %308 = vmatpush2.xpose.msra.mxu0 0.0
        %309 = vmatprep.subr.mxu0 0.0
        %310 = vmatpush2.xpose.msra.mxu0 0.0
        %311 = vmatprep.subr.mxu0 0.0
        %312 = vmatpush2.xpose.msra.mxu0 0.0
        %313 = vmatprep.subr.mxu0 0.0
        %314 = vmatpush2.xpose.msra.mxu0 0.0
        %315 = vmatprep.subr.mxu0 0.0
        %316 = vmatpush2.xpose.msra.mxu0 0.0
        %317 = vmatprep.subr.mxu0 0.0
        %318 = vmatpush2.xpose.msra.mxu0 0.0
        %319 = vmatprep.subr.mxu0 0.0
        %320 = vmatpush2.xpose.msra.mxu0 0.0
        %321 = vmatprep.subr.mxu0 0.0
        %322 = vmatpush2.xpose.msra.mxu0 0.0
        %323 = vmatprep.subr.mxu0 0.0
        %324 = vmatpush2.xpose.msra.mxu0 0.0
        %325 = vmatprep.subr.mxu0 0.0
        %326 = vmatpush2.xpose.msra.mxu0 0.0
        %327 = vmatprep.subr.mxu0 0.0
        %328 = vmatpush2.xpose.msra.mxu0 0.0
        %329 = vmatprep.subr.mxu0 0.0
        %330 = vmatpush2.xpose.msra.mxu0 0.0
        %331 = vmatprep.subr.mxu0 0.0
        %332 = vmatpush2.xpose.msra.mxu0 0.0
        %333 = vmatprep.subr.mxu0 0.0
        %334 = vmatpush2.xpose.msra.mxu0 0.0
        %335 = vmatprep.subr.mxu0 0.0
        %336 = vmatpush2.xpose.msra.mxu0 0.0
        %337 = vmatprep.subr.mxu0 0.0
        %338 = vmatpush2.xpose.msra.mxu0 0.0
        %339 = vmatprep.mubr.f32.mxu0 0.0
        %340 = vmatmul.mubr.f32.gmra.mxu0 %v267
        %v341 = vpop.f32.mrf.mxu0
        %v342 = vadd.f32 0.0, %v341
        %v343 = vpop.f32.mrf.mxu0
        %344 = vmatprep.mubr.f32.mxu0 0.0
        %345 = vmatmul.mubr.f32.gmra.mxu0 %v270
        %v346 = vpop.f32.mrf.mxu0
        %v347 = vadd.f32 0.0, %v346
        %v348 = vpop.f32.mrf.mxu0
        %349 = vdwg.mxu0
        %v350 = vld [vmem:[#allocation5] sm:$0xff]
        %v351 = vld [vmem:[%s2] sm:$0x1]
        %v353 = vsel %vm265, %v342, 0
        %v356 = vsel %vm265, %v347, 0
        %358 = vmatprep.subr.mxu0 0.0
        %359 = vmatpush1.msra.mxu0 0.0
        %360 = vmatprep.subr.mxu0 0.0
        %361 = vmatpush1.msra.mxu0 0.0
        %362 = vmatprep.subr.mxu0 0.0
        %363 = vmatpush1.msra.mxu0 0.0
        %364 = vmatprep.subr.mxu0 0.0
        %365 = vmatpush1.msra.mxu0 0.0
        %366 = vmatprep.subr.mxu0 0.0
        %367 = vmatpush1.msra.mxu0 0.0
        %368 = vmatprep.subr.mxu0 0.0
        %369 = vmatpush1.msra.mxu0 0.0
        %370 = vmatprep.subr.mxu0 0.0
        %371 = vmatpush1.msra.mxu0 0.0
        %372 = vmatprep.subr.mxu0 0.0
        %373 = vmatpush1.msra.mxu0 0.0
        %374 = vmatprep.subr.mxu0 0.0
        %375 = vmatpush1.msra.mxu0 0.0
        %376 = vmatprep.subr.mxu0 0.0
        %377 = vmatpush1.msra.mxu0 0.0
        %378 = vmatprep.subr.mxu0 0.0
        %379 = vmatpush1.msra.mxu0 0.0
        %380 = vmatprep.subr.mxu0 0.0
        %381 = vmatpush1.msra.mxu0 0.0
        %382 = vmatprep.subr.mxu0 0.0
        %383 = vmatpush1.msra.mxu0 0.0
        %384 = vmatprep.subr.mxu0 0.0
        %385 = vmatpush1.msra.mxu0 0.0
        %386 = vmatprep.subr.mxu0 0.0
        %387 = vmatpush1.msra.mxu0 0.0
        %388 = vmatprep.subr.mxu0 0.0
        %389 = vmatpush1.msra.mxu0 %v350
        %390 = vmatprep.subr.mxu0 0.0
        %391 = vmatpush2.msra.mxu0 0.0
        %392 = vmatprep.subr.mxu0 0.0
        %393 = vmatpush2.msra.mxu0 0.0
        %394 = vmatprep.subr.mxu0 0.0
        %395 = vmatpush2.msra.mxu0 0.0
        %396 = vmatprep.subr.mxu0 0.0
        %397 = vmatpush2.msra.mxu0 0.0
        %398 = vmatprep.subr.mxu0 0.0
        %399 = vmatpush2.msra.mxu0 0.0
        %400 = vmatprep.subr.mxu0 0.0
        %401 = vmatpush2.msra.mxu0 0.0
        %402 = vmatprep.subr.mxu0 0.0
        %403 = vmatpush2.msra.mxu0 0.0
        %404 = vmatprep.subr.mxu0 0.0
        %405 = vmatpush2.msra.mxu0 0.0
        %406 = vmatprep.subr.mxu0 0.0
        %407 = vmatpush2.msra.mxu0 0.0
        %408 = vmatprep.subr.mxu0 0.0
        %409 = vmatpush2.msra.mxu0 0.0
        %410 = vmatprep.subr.mxu0 0.0
        %411 = vmatpush2.msra.mxu0 0.0
        %412 = vmatprep.subr.mxu0 0.0
        %413 = vmatpush2.msra.mxu0 0.0
        %414 = vmatprep.subr.mxu0 0.0
        %415 = vmatpush2.msra.mxu0 0.0
        %416 = vmatprep.subr.mxu0 0.0
        %417 = vmatpush2.msra.mxu0 0.0
        %418 = vmatprep.subr.mxu0 0.0
        %419 = vmatpush2.msra.mxu0 0.0
        %420 = vmatprep.subr.mxu0 0.0
        %421 = vmatpush2.msra.mxu0 0.0
        %422 = vmatprep.mubr.f32.mxu0 0.0
        %423 = vmatmul.mubr.f32.gmra.mxu0 %v353
        %v424 = vpop.f32.mrf.mxu0
        %v425 = vadd.f32 0.0, %v424
        %v426 = vpop.f32.mrf.mxu0
        %427 = vmatprep.mubr.f32.mxu0 0.0
        %428 = vmatmul.mubr.f32.gmra.mxu0 %v356
        %v429 = vpop.f32.mrf.mxu0
        %v430 = vadd.f32 0.0, %v429
        %v431 = vpop.f32.mrf.mxu0
        %432 = vdwg.mxu0
        %435 = vrot.lane.b32.xlu0 %v425, 124
        %v436 = vpop.permute.xlu0 %435
        %437 = vrot.lane.b32.xlu0 %v430, 124
        %v438 = vpop.permute.xlu0 %437
        %v441 = vrot.slane %v436, 7
        %v442 = vrot.slane %v438, 7
        %vm443 = vcmp.lt.s32.totalorder %v255, 1
        %v444 = vsel %vm443, %v441, %v442
        %v445 = vsel %vm443, %v442, %v441
        %v446 = vadd.f32 %v425, %v445
        %v447 = vadd.f32 %v430, %v444
        %v449 = vlaneseq
        %v450 = vshrl.u32 %v449, 7
        %v451 = vsub.s32 0, %v450
        %v452 = vrot.slane %v351, %v451
        %v454 = vadd.f32 %v446, %v452
        %v455 = vadd.f32 %v447, %v452
        %vm456 = vcmp.lt.s32.totalorder %v255, 9
        %vm457 = vcmp.lt.s32.totalorder %v256, 9
        %v458 = vmax.f32 %v454, 0.0
        %v459 = vmax.f32 %v455, 0.0
        %v460 = vsel %vm456, 1, 0
        %v461 = vsel %vm457, 1, 0
        %vm462 = vcmp.eq.s32.totalorder %v460, 1
        %vm463 = vcmp.eq.s32.totalorder %v461, 1
        %v464 = vsel %vm462, %v458, 0.0
        %v465 = vsel %vm463, %v459, 0.0
        %v466 = vld [vmem:[%s3] sm:$0xf]
        %v467 = vld [vmem:[%s4] sm:$0x3]
        %vm468 = vcmask 31744
        %v470 = vsel %vm468, %v466, 0
        %v473 = vsel %vm468, %v464, 0
        %v476 = vsel %vm468, %v465, 0
        %478 = vmatprep.subr.mxu0 0.0
        %479 = vmatpush1.xpose.msra.mxu0 0.0
        %480 = vmatprep.subr.mxu0 0.0
        %481 = vmatpush1.xpose.msra.mxu0 0.0
        %482 = vmatprep.subr.mxu0 0.0
        %483 = vmatpush1.xpose.msra.mxu0 0.0
        %484 = vmatprep.subr.mxu0 0.0
        %485 = vmatpush1.xpose.msra.mxu0 0.0
        %486 = vmatprep.subr.mxu0 0.0
        %487 = vmatpush1.xpose.msra.mxu0 0.0
        %488 = vmatprep.subr.mxu0 0.0
        %489 = vmatpush1.xpose.msra.mxu0 0.0
        %490 = vmatprep.subr.mxu0 0.0
        %491 = vmatpush1.xpose.msra.mxu0 0.0
        %492 = vmatprep.subr.mxu0 0.0
        %493 = vmatpush1.xpose.msra.mxu0 0.0
        %494 = vmatprep.subr.mxu0 0.0
        %495 = vmatpush1.xpose.msra.mxu0 0.0
        %496 = vmatprep.subr.mxu0 0.0
        %497 = vmatpush1.xpose.msra.mxu0 0.0
        %498 = vmatprep.subr.mxu0 0.0
        %499 = vmatpush1.xpose.msra.mxu0 0.0
        %500 = vmatprep.subr.mxu0 0.0
        %501 = vmatpush1.xpose.msra.mxu0 0.0
        %502 = vmatprep.subr.mxu0 0.0
        %503 = vmatpush1.xpose.msra.mxu0 0.0
        %504 = vmatprep.subr.mxu0 0.0
        %505 = vmatpush1.xpose.msra.mxu0 0.0
        %506 = vmatprep.subr.mxu0 0.0
        %507 = vmatpush1.xpose.msra.mxu0 %v476
        %508 = vmatprep.subr.mxu0 0.0
        %509 = vmatpush1.xpose.msra.mxu0 %v473
        %510 = vmatprep.subr.mxu0 0.0
        %511 = vmatpush2.xpose.msra.mxu0 0.0
        %512 = vmatprep.subr.mxu0 0.0
        %513 = vmatpush2.xpose.msra.mxu0 0.0
        %514 = vmatprep.subr.mxu0 0.0
        %515 = vmatpush2.xpose.msra.mxu0 0.0
        %516 = vmatprep.subr.mxu0 0.0
        %517 = vmatpush2.xpose.msra.mxu0 0.0
        %518 = vmatprep.subr.mxu0 0.0
        %519 = vmatpush2.xpose.msra.mxu0 0.0
        %520 = vmatprep.subr.mxu0 0.0
        %521 = vmatpush2.xpose.msra.mxu0 0.0
        %522 = vmatprep.subr.mxu0 0.0
        %523 = vmatpush2.xpose.msra.mxu0 0.0
        %524 = vmatprep.subr.mxu0 0.0
        %525 = vmatpush2.xpose.msra.mxu0 0.0
        %526 = vmatprep.subr.mxu0 0.0
        %527 = vmatpush2.xpose.msra.mxu0 0.0
        %528 = vmatprep.subr.mxu0 0.0
        %529 = vmatpush2.xpose.msra.mxu0 0.0
        %530 = vmatprep.subr.mxu0 0.0
        %531 = vmatpush2.xpose.msra.mxu0 0.0
        %532 = vmatprep.subr.mxu0 0.0
        %533 = vmatpush2.xpose.msra.mxu0 0.0
        %534 = vmatprep.subr.mxu0 0.0
        %535 = vmatpush2.xpose.msra.mxu0 0.0
        %536 = vmatprep.subr.mxu0 0.0
        %537 = vmatpush2.xpose.msra.mxu0 0.0
        %538 = vmatprep.subr.mxu0 0.0
        %539 = vmatpush2.xpose.msra.mxu0 0.0
        %540 = vmatprep.subr.mxu0 0.0
        %541 = vmatpush2.xpose.msra.mxu0 0.0
        %542 = vmatprep.mubr.f32.mxu0 0.0
        %543 = vmatmul.mubr.f32.gmra.mxu0 %v470
        %v544 = vpop.f32.mrf.mxu0
        %v545 = vadd.f32 0.0, %v544
        %v546 = vpop.f32.mrf.mxu0
        %547 = vdwg.mxu0
        %v549 = vrot.slane %v545, 2
        %vm551 = vcmask 1047680
        %552 = vrot.lane.b32.xlu0 %v549, 16
        %v553 = vpop.permute.xlu0 %552
        %v554 = vsel %vm551, %v553, %v549
        %555 = vrot.lane.b32.xlu0 %v554, 16
        %v556 = vpop.permute.xlu0 %555
        %v557 = vsel %vm551, %v556, %v549
        %559 = vrot.lane.b32.xlu0 %v557, 113
        %v560 = vpop.permute.xlu0 %559
        %v562 = vadd.f32 %v545, %v560
        %564 = vset.pattern.permute.xlu0 0
        %565 = vperm.xlu0 %564, %v467
        %v566 = vpop.permute.xlu0 %565
        %v568 = vadd.f32 %v562, %v566
        %v569 = vmax.f32 %v568, 0.0
        %vm570 = vcmask 74752
        %571 = vst.msk [vmem:[%s252] sm:$0x3] %vm570, %v569
        %s572 = sand.u32 %s141, 1
        %s573 = scalar_lea.sflag [#allocation4], %s572
        %s574 = sand.u32 %s141, 1
        %s575 = smul.addr %s574, 2
        %s576 = scalar_lea.vmem [#allocation7], %s575
        // Predicated region
        $region49: #{tpu_custom_call.1} parent=39 // pred_check
          %p577 = pneg %p151
        $region50: #{tpu_custom_call.1} parent=39 // pred_check_branch
          %579 = sbr.rel (%p577) target = $region52
        $region51: #{tpu_custom_call.1} parent=39 // pred_region
          %s581 = ssub.s32 32, 32
          %582 = vsyncadd %s573, %s581
          %s583 = smul.addr %s23, 32
          %s584 = scalar_lea.hbm %s5, %s583
          %s586 = sshll.u32 %s576, 4
          %s587 = int_to_ptr.vmem [resolvable:$true] %s586
          %589 = dma.vmem_to_hbm [thread:$0]  %s587, 32, %s584, %s573
        $region52: #{tpu_custom_call.1} parent=39 // pred_fallthru
          _
      $region40: #{tpu_custom_call.1} parent=5 // pred_fallthru
        _
      %p590 = scmp.le.s32.totalorder 2, %s18
      // Predicated region
      $region53: #{tpu_custom_call.1} parent=5 // pred_check
        %p591 = pneg %p590
      $region54: #{tpu_custom_call.1} parent=5 // pred_check_branch
        %593 = sbr.rel (%p591) target = $region56
      $region55: #{tpu_custom_call.1} parent=5 // pred_region
        %s594 = ssub.s32 %s18, 2
        // Predicated region
        $region57: #{tpu_custom_call.1} parent=55 // pred_check
          %p595 = pneg %p157
        $region58: #{tpu_custom_call.1} parent=55 // pred_check_branch
          %597 = sbr.rel (%p595) target = $region60
        $region59: #{tpu_custom_call.1} parent=55 // pred_region
          %s598 = sand.u32 %s142, 1
          %s599 = scalar_lea.sflag [#allocation4], %s598
          %s600 = sand.u32 %s142, 1
          %s601 = smul.addr %s600, 2
          %s602 = scalar_lea.vmem [#allocation7], %s601
          %603 = dma.done %s599, 32
        $region60: #{tpu_custom_call.1} parent=55 // pred_fallthru
          _
      $region56: #{tpu_custom_call.1} parent=5 // pred_fallthru
        _
    $region6: #{tpu_custom_call.1} parent=1 // loop_footer
      %s22 = sadd.s32 1, %s18
    $region7: #{tpu_custom_call.1} parent=1 // loop_footer_branch
      %17 = sbr.rel target = $region3
    $region8: #{tpu_custom_call.1} parent=1 // loop_exit
      _
    %604 = vsyncpa [#allocation3], 1
    %s605 = scalar_lea.sflag [#allocation3], 1
    %606 = vsyncpa %s605, 1
    %607 = vsyncpa [#allocation6], 1
    %608 = vsyncpa [#allocation4], 1
    %s609 = scalar_lea.sflag [#allocation4], 1
    %610 = vsyncpa %s609, 1

</llo_original>
